<compile_context>
chip_gen: v7x
topology: tpu7x:2x2x1
jax: 0.10.0
libtpu: 0.0.40
codegen_flags: <defaults>
</compile_context>

<pallas_src>
import jax
import jax.numpy as jnp
from jax.experimental import pallas as pl
from jax.experimental.pallas import tpu as pltpu


def _round_up(n, m):
    return ((n + m - 1) // m) * m


def _disc_kernel(x_ref, w1_ref, b1_ref, w2_ref, b2_ref, w3_ref, b3_ref, o_ref):
    """One batch tile: x [TB, F] bf16 -> sigmoid scores stored lane-dense [1, TB]."""
    x = x_ref[...]                                               # [TB, F] bf16

    # Layer 1: Linear + ReLU (drop1 = identity in eval mode).
    h1 = jnp.dot(x, w1_ref[...], preferred_element_type=jnp.float32) + b1_ref[...]
    h1 = jnp.maximum(h1, 0.0)

    # Layer 2: Linear + ReLU (drop2 = identity in eval mode).
    h2 = jnp.dot(h1.astype(jnp.bfloat16), w2_ref[...],
                 preferred_element_type=jnp.float32) + b2_ref[...]
    h2 = jnp.maximum(h2, 0.0)

    # Layer 3: Linear(hidden, 1).  Done on the VPU (broadcast multiply) + XLU
    # (lane reduction) instead of a [TB,H]x[H,1] MXU GEMV.
    d = jnp.sum(h2 * w3_ref[...], axis=-1).reshape(1, -1) + b3_ref[...]   # [1, TB] f32

    # Sigmoid via EUP exp + approximate EUP reciprocal.
    o_ref[...] = pl.reciprocal(1.0 + jnp.exp(-d), approx=True)


def discriminator_forward(x, w1, b1, w2, b2, w3, b3, *, alpha=None, tb=512):
    """x: [B, bottleneck] f32.  Weights stored [in, out] (= torch weight.T).

    `alpha` is accepted for API parity with the torch module; ReverseLayerF is
    identity in the forward pass so it is unused here.
    """
    del alpha
    B, F = x.shape
    H = w1.shape[1]

    # Batch tile: multiple of 128 so output stores are lane-dense/unmasked and
    # the bf16 sublane packing constraints are satisfied.
    tb = min(tb, _round_up(B, 128))
    Bp = _round_up(B, tb)
    if Bp != B:
        x = jnp.pad(x, ((0, Bp - B), (0, 0)))
    num_tiles = Bp // tb

    # bf16 MXU inputs (2x MXU throughput on v6e/v7x, half the DMA bytes);
    # accumulation stays f32 via preferred_element_type.
    x_bf = x.astype(jnp.bfloat16)
    w1_bf = w1.astype(jnp.bfloat16)
    w2_bf = w2.astype(jnp.bfloat16)
    b1_m = b1.reshape(1, H).astype(jnp.float32)
    b2_m = b2.reshape(1, H).astype(jnp.float32)
    w3_row = w3.reshape(1, H).astype(jnp.float32)   # final layer stays f32 on the VPU
    b3_m = b3.reshape(1, 1).astype(jnp.float32)

    # Weight/bias blocks: constant index_map -> resident in VMEM across all steps.
    def resident(a):
        return pl.BlockSpec(a.shape, lambda i, _n=a.ndim: (0,) * _n)

    # VMEM footprint is tiny at these shapes (tb=512 bf16 x-tile ~32 KB plus a
    # few KB of weights); re-derive tb / set vmem_limit_bytes if hidden is
    # scaled up (v7x has only 64 MiB physical VMEM).
    out = pl.pallas_call(
        _disc_kernel,
        out_shape=jax.ShapeDtypeStruct((1, Bp), jnp.float32),
        grid=(num_tiles,),
        in_specs=[
            pl.BlockSpec((tb, F), lambda i: (i, 0)),   # x: tiled over batch
            resident(w1_bf), resident(b1_m),
            resident(w2_bf), resident(b2_m),
            resident(w3_row), resident(b3_m),
        ],
        out_specs=pl.BlockSpec((1, tb), lambda i: (0, i)),   # lane-dense output row
        compiler_params=pltpu.CompilerParams(
            dimension_semantics=("parallel",)),              # shard batch tiles (v7x 2 TCs)
    )(x_bf, w1_bf, b1_m, w2_bf, b2_m, w3_row, b3_m)

    return out[0, :B].reshape(B, 1)


def init_params(key, bottleneck, hidden):
    """Init matching the scale of the torch module's explicit init (normal_/fill_)."""
    k1, k2, k3 = jax.random.split(key, 3)
    # torch nn.Linear weight is [out, in]; we store [in, out] (the transpose).
    w1 = jax.random.normal(k1, (bottleneck, hidden), jnp.float32) * 0.01
    b1 = jnp.zeros((hidden,), jnp.float32)
    w2 = jax.random.normal(k2, (hidden, hidden), jnp.float32) * 0.01
    b2 = jnp.zeros((hidden,), jnp.float32)
    w3 = jax.random.normal(k3, (hidden, 1), jnp.float32) * 0.3
    b3 = jnp.zeros((1,), jnp.float32)
    return w1, b1, w2, b2, w3, b3


if __name__ == "__main__":
    # Non-multiple batch exercises the padding path and a 2-step batch grid.
    B, bottleneck, hidden = 200, 32, 32

    key = jax.random.PRNGKey(0)
    kx, kp = jax.random.split(key)
    x = jax.random.normal(kx, (B, bottleneck), jnp.float32)
    w1, b1, w2, b2, w3, b3 = init_params(kp, bottleneck, hidden)

    out = discriminator_forward(x, w1, b1, w2, b2, w3, b3, tb=128)
    out = jax.block_until_ready(out)

    # Pure-JAX f32 reference of the same forward semantics (eval-mode dropout,
    # ReverseLayerF identity).
    h1 = jnp.maximum(x @ w1 + b1[None, :], 0.0)
    h2 = jnp.maximum(h1 @ w2 + b2[None, :], 0.0)
    ref = jax.nn.sigmoid(h2 @ w3 + b3[None, :])

    assert out.shape == (B, 1)
    # Tolerance covers bf16 MXU inputs + approximate EUP reciprocal.
    assert jnp.allclose(out, ref, atol=5e-3, rtol=0.0), \
        float(jnp.max(jnp.abs(out - ref)))

    print("KERNEL_OK")
</pallas_src>

<mosaic_0001>
module attributes {stable_mosaic.version = 11 : i64} {
  func.func @_disc_kernel(%arg0: i32, %arg1: memref<128x32xbf16, #tpu.memory_space<vmem>>, %arg2: memref<32x32xbf16, #tpu.memory_space<vmem>>, %arg3: memref<1x32xf32, #tpu.memory_space<vmem>>, %arg4: memref<32x32xbf16, #tpu.memory_space<vmem>>, %arg5: memref<1x32xf32, #tpu.memory_space<vmem>>, %arg6: memref<1x32xf32, #tpu.memory_space<vmem>>, %arg7: memref<1x1xf32, #tpu.memory_space<vmem>>, %arg8: memref<1x128xf32, #tpu.memory_space<vmem>>) attributes {dimension_semantics = [#tpu.dimension_semantics<parallel>], iteration_bounds = array<i64: 2>, scalar_prefetch = 0 : i64, scratch_operands = 0 : i64, tpu.core_type = #tpu.core_type<tc>, window_params = [{transform_indices = @transform_0, window_bounds = array<i64: 128, 32>}, {pipeline_mode = #tpu.pipeline_mode<synchronous>, transform_indices = @transform_1, window_bounds = array<i64: 32, 32>}, {pipeline_mode = #tpu.pipeline_mode<synchronous>, transform_indices = @transform_2, window_bounds = array<i64: 1, 32>}, {pipeline_mode = #tpu.pipeline_mode<synchronous>, transform_indices = @transform_3, window_bounds = array<i64: 32, 32>}, {pipeline_mode = #tpu.pipeline_mode<synchronous>, transform_indices = @transform_4, window_bounds = array<i64: 1, 32>}, {pipeline_mode = #tpu.pipeline_mode<synchronous>, transform_indices = @transform_5, window_bounds = array<i64: 1, 32>}, {pipeline_mode = #tpu.pipeline_mode<synchronous>, transform_indices = @transform_6, window_bounds = array<i64: 1, 1>}, {transform_indices = @transform_7, window_bounds = array<i64: 1, 128>}]} {
    %c0 = arith.constant 0 : index
    %c0_0 = arith.constant 0 : index
    %0 = vector.load %arg1[%c0, %c0_0] : memref<128x32xbf16, #tpu.memory_space<vmem>>, vector<128x32xbf16>
    %c0_1 = arith.constant 0 : index
    %c0_2 = arith.constant 0 : index
    %1 = vector.load %arg2[%c0_1, %c0_2] : memref<32x32xbf16, #tpu.memory_space<vmem>>, vector<32x32xbf16>
    %cst = arith.constant dense<0.000000e+00> : vector<128x32xf32>
    %2 = tpu.matmul %0, %1, %cst {dimension_numbers = #tpu.dot_dimension_numbers<[1], [0], [0], [1], [0, 0, 1, 1], [], []>} : vector<128x32xbf16>, vector<32x32xbf16>, vector<128x32xf32> -> vector<128x32xf32>
    %c0_3 = arith.constant 0 : index
    %c0_4 = arith.constant 0 : index
    %3 = vector.load %arg3[%c0_3, %c0_4] : memref<1x32xf32, #tpu.memory_space<vmem>>, vector<1x32xf32>
    %4 = vector.broadcast %3 : vector<1x32xf32> to vector<128x32xf32>
    %5 = arith.addf %2, %4 : vector<128x32xf32>
    %cst_5 = arith.constant 0.000000e+00 : f32
    %6 = vector.broadcast %cst_5 : f32 to vector<128x32xf32>
    %7 = arith.maximumf %5, %6 : vector<128x32xf32>
    %8 = arith.truncf %7 : vector<128x32xf32> to vector<128x32xbf16>
    %c0_6 = arith.constant 0 : index
    %c0_7 = arith.constant 0 : index
    %9 = vector.load %arg4[%c0_6, %c0_7] : memref<32x32xbf16, #tpu.memory_space<vmem>>, vector<32x32xbf16>
    %cst_8 = arith.constant dense<0.000000e+00> : vector<128x32xf32>
    %10 = tpu.matmul %8, %9, %cst_8 {dimension_numbers = #tpu.dot_dimension_numbers<[1], [0], [0], [1], [0, 0, 1, 1], [], []>} : vector<128x32xbf16>, vector<32x32xbf16>, vector<128x32xf32> -> vector<128x32xf32>
    %c0_9 = arith.constant 0 : index
    %c0_10 = arith.constant 0 : index
    %11 = vector.load %arg5[%c0_9, %c0_10] : memref<1x32xf32, #tpu.memory_space<vmem>>, vector<1x32xf32>
    %12 = vector.broadcast %11 : vector<1x32xf32> to vector<128x32xf32>
    %13 = arith.addf %10, %12 : vector<128x32xf32>
    %cst_11 = arith.constant 0.000000e+00 : f32
    %14 = vector.broadcast %cst_11 : f32 to vector<128x32xf32>
    %15 = arith.maximumf %13, %14 : vector<128x32xf32>
    %c0_12 = arith.constant 0 : index
    %c0_13 = arith.constant 0 : index
    %16 = vector.load %arg6[%c0_12, %c0_13] : memref<1x32xf32, #tpu.memory_space<vmem>>, vector<1x32xf32>
    %17 = vector.broadcast %16 : vector<1x32xf32> to vector<128x32xf32>
    %18 = arith.mulf %15, %17 : vector<128x32xf32>
    %cst_14 = arith.constant dense<0.000000e+00> : vector<128xf32>
    %19 = vector.multi_reduction <add>, %18, %cst_14 [1] : vector<128x32xf32> to vector<128xf32>
    %20 = vector.shape_cast %19 : vector<128xf32> to vector<1x128xf32>
    %c0_15 = arith.constant 0 : index
    %c0_16 = arith.constant 0 : index
    %21 = vector.load %arg7[%c0_15, %c0_16] : memref<1x1xf32, #tpu.memory_space<vmem>>, vector<1x1xf32>
    %22 = vector.broadcast %21 : vector<1x1xf32> to vector<1x128xf32>
    %23 = arith.addf %20, %22 : vector<1x128xf32>
    %cst_17 = arith.constant 0.000000e+00 : f32
    %24 = vector.broadcast %cst_17 : f32 to vector<1x128xf32>
    %25 = arith.subf %24, %23 : vector<1x128xf32>
    %26 = math.exp %25 : vector<1x128xf32>
    %cst_18 = arith.constant 1.000000e+00 : f32
    %27 = vector.broadcast %cst_18 : f32 to vector<1x128xf32>
    %28 = arith.addf %27, %26 : vector<1x128xf32>
    %29 = tpu.reciprocal %28 {approx = true} : vector<1x128xf32> -> vector<1x128xf32>
    %c0_19 = arith.constant 0 : index
    %c0_20 = arith.constant 0 : index
    %30 = vector.load %arg8[%c0_19, %c0_20] : memref<1x128xf32, #tpu.memory_space<vmem>>, vector<1x128xf32>
    tpu.vector_store %arg8[%c0_19, %c0_20], %29 {strides = array<i32>} : memref<1x128xf32, #tpu.memory_space<vmem>>, vector<1x128xf32>,
    return
  }
  func.func @transform_0(%arg0: i32) -> (i32, i32) {
    %c0_i32 = arith.constant 0 : i32
    %c0_i32_0 = arith.constant 0 : i32
    return %arg0, %c0_i32 : i32, i32
  }
  func.func @transform_1(%arg0: i32) -> (i32, i32) {
    %c0_i32 = arith.constant 0 : i32
    %c0_i32_0 = arith.constant 0 : i32
    %c0_i32_1 = arith.constant 0 : i32
    return %c0_i32, %c0_i32_0 : i32, i32
  }
  func.func @transform_2(%arg0: i32) -> (i32, i32) {
    %c0_i32 = arith.constant 0 : i32
    %c0_i32_0 = arith.constant 0 : i32
    %c0_i32_1 = arith.constant 0 : i32
    return %c0_i32, %c0_i32_0 : i32, i32
  }
  func.func @transform_3(%arg0: i32) -> (i32, i32) {
    %c0_i32 = arith.constant 0 : i32
    %c0_i32_0 = arith.constant 0 : i32
    %c0_i32_1 = arith.constant 0 : i32
    return %c0_i32, %c0_i32_0 : i32, i32
  }
  func.func @transform_4(%arg0: i32) -> (i32, i32) {
    %c0_i32 = arith.constant 0 : i32
    %c0_i32_0 = arith.constant 0 : i32
    %c0_i32_1 = arith.constant 0 : i32
    return %c0_i32, %c0_i32_0 : i32, i32
  }
  func.func @transform_5(%arg0: i32) -> (i32, i32) {
    %c0_i32 = arith.constant 0 : i32
    %c0_i32_0 = arith.constant 0 : i32
    %c0_i32_1 = arith.constant 0 : i32
    return %c0_i32, %c0_i32_0 : i32, i32
  }
  func.func @transform_6(%arg0: i32) -> (i32, i32) {
    %c0_i32 = arith.constant 0 : i32
    %c0_i32_0 = arith.constant 0 : i32
    %c0_i32_1 = arith.constant 0 : i32
    return %c0_i32, %c0_i32_0 : i32, i32
  }
  func.func @transform_7(%arg0: i32) -> (i32, i32) {
    %c0_i32 = arith.constant 0 : i32
    %c0_i32_0 = arith.constant 0 : i32
    return %c0_i32, %arg0 : i32, i32
  }
}

</mosaic_0001>

<llo_original>
// kernel: tpu_custom_call.1
$region0: #{tpu_custom_call.1}
  #allocation0 [shape = 'u32[]', space=smem, size = 0x4, offset = 0x4, fixed_abs, tag = 'smem constant byte address 0x4 - core index']
  #allocation1 [shape = 'u32[144,128]{1,0:T(1,128)}', space=vmem, size = 0x12000, scoped, tag = 'internal scratch']
  #allocation2 [shape = 'f32[1,1]{1,0:T(1,128)S(1)}', space=vmem, size = 0x200, scoped, tag = 'scoped memory for tpu_custom_call.1']
  %s0 = inlined_call_operand.vmem [shape: bf16[256,32], index: 0, kind: input, shape index: {}]
  %s1 = inlined_call_operand.vmem [shape: bf16[32,32], index: 1, kind: input, shape index: {}]
  %s2 = inlined_call_operand.vmem [shape: f32[1,32], index: 2, kind: input, shape index: {}]
  %s3 = inlined_call_operand.vmem [shape: bf16[32,32], index: 3, kind: input, shape index: {}]
  %s4 = inlined_call_operand.vmem [shape: f32[1,32], index: 4, kind: input, shape index: {}]
  %s5 = inlined_call_operand.vmem [shape: f32[1,32], index: 5, kind: input, shape index: {}]
  %s6 = inlined_call_operand.<no memory space> [shape: f32[1,1], index: 6, kind: input, shape index: {}]
  %s7 = inlined_call_operand.hbm [shape: f32[1,256], index: 7, kind: output, shape index: {}]
  %s8 = sld [smem:[#allocation0]]
  $region61: #{tpu_custom_call.1} parent=0
    _
  %s10 = ssub.s32 1, %s8
  %s11 = scalar_select 0, %s10, %s8
  %v12 = vstv %s6
  %13 = vst [vmem:[#allocation2] sm:$0x1] %v12
  $region1: #{tpu_custom_call.1} parent=0
    #allocation3 [shape = 'u8[1024]{0}', space=vmem, size = 0x400, scoped, tag = 'output window, operand 0']
    #allocation4 [shape = 's32[2]{0}', space=sflag, size = 0x8, scoped, tag = 'scoped memory for tpu_custom_call.1']
    %14 = vsyncpa [#allocation4], 0
    %s15 = scalar_lea.sflag [#allocation4], 1
    %16 = vsyncpa %s15, 0
    loop: start=0, step=1, limit=4
    $region2: #{tpu_custom_call.1} parent=1 // loop_pre_header
      _
    $region3: #{tpu_custom_call.1} parent=1 // loop_header
      %s18 = sphi 0, %s22
      %p19 = scmp.ge.s32.totalorder %s18, 4
      %s28 = sphi 0, %s30
      %s31 = sphi 0, %s28
      %s32 = sphi 0, %s31
      %s48 = sphi 0, %s32
      %s52 = sphi 0, %s52
      %s54 = sphi 0, %s52
      %s55 = sphi 0, %s54
      %s69 = sphi 0, %s55
      %s73 = sphi 0, %s73
      %s75 = sphi 0, %s73
      %s76 = sphi 0, %s75
      %s90 = sphi 0, %s76
      %s94 = sphi 0, %s94
      %s96 = sphi 0, %s94
      %s97 = sphi 0, %s96
      %s111 = sphi 0, %s97
      %s115 = sphi 0, %s115
      %s117 = sphi 0, %s115
      %s118 = sphi 0, %s117
      %s132 = sphi 0, %s118
      %s136 = sphi 0, %s136
      %s138 = sphi 0, %s136
      %s139 = sphi 0, %s138
      %s153 = sphi 0, %s139
      %s157 = sphi 0, %s157
      %s159 = sphi 0, %s157
      %s160 = sphi 0, %s159
      %s174 = sphi 0, %s160
      %s180 = sphi 0, %s182
      %s183 = sphi 0, %s180
      %s184 = sphi 0, %s183
      %s200 = sphi 0, %s184
    $region4: #{tpu_custom_call.1} parent=1 // loop_header_branch
      %21 = sbr.rel (%p19) target = $region8
    $region5: #{tpu_custom_call.1} parent=1 // loop_body
      %s23 = ssub.s32 %s18, 1
      %s24 = ssub.s32 %s18, 2
      %s25 = sadd.s32 %s18, 1
      %s26 = ssub.s32 %s18, %s25
      %p27 = scmp.eq.s32.totalorder %s26, 0
      %s29 = sadd.s32 %s28, 1
      %s30 = scalar_select %p27, %s28, %s29
      %p33 = pneg %p27
      %p34 = scmp.eq.s32.totalorder %s18, 1
      %p35 = por %p33, %p34
      %p36 = scmp.ne.s32.totalorder %s28, %s31
      %p37 = scmp.eq.s32.totalorder %s18, 0
      %p38 = por %p36, %p37
      %p39 = scmp.ne.s32.totalorder %s28, %s31
      %p40 = scmp.eq.s32.totalorder %s23, 1
      %p41 = por %p39, %p40
      %p42 = scmp.ne.s32.totalorder %s31, %s32
      %p43 = scmp.eq.s32.totalorder %s23, 0
      %p44 = por %p42, %p43
      %p45 = scmp.ne.s32.totalorder %s31, %s32
      %p46 = scmp.eq.s32.totalorder %s24, 1
      %p47 = por %p45, %p46
      %p49 = scmp.ne.s32.totalorder %s32, %s48
      %p50 = scmp.eq.s32.totalorder %s24, 0
      %p51 = por %p49, %p50
      %s53 = sadd.s32 %s52, 1
      %p56 = scmp.eq.s32.totalorder %s18, 1
      %p57 = scmp.ne.s32.totalorder %s52, %s54
      %p58 = scmp.eq.s32.totalorder %s18, 0
      %p59 = por %p57, %p58
      %p60 = scmp.ne.s32.totalorder %s52, %s54
      %p61 = scmp.eq.s32.totalorder %s23, 1
      %p62 = por %p60, %p61
      %p63 = scmp.ne.s32.totalorder %s54, %s55
      %p64 = scmp.eq.s32.totalorder %s23, 0
      %p65 = por %p63, %p64
      %p66 = scmp.ne.s32.totalorder %s54, %s55
      %p67 = scmp.eq.s32.totalorder %s24, 1
      %p68 = por %p66, %p67
      %p70 = scmp.ne.s32.totalorder %s55, %s69
      %p71 = scmp.eq.s32.totalorder %s24, 0
      %p72 = por %p70, %p71
      %s74 = sadd.s32 %s73, 1
      %p77 = scmp.eq.s32.totalorder %s18, 1
      %p78 = scmp.ne.s32.totalorder %s73, %s75
      %p79 = scmp.eq.s32.totalorder %s18, 0
      %p80 = por %p78, %p79
      %p81 = scmp.ne.s32.totalorder %s73, %s75
      %p82 = scmp.eq.s32.totalorder %s23, 1
      %p83 = por %p81, %p82
      %p84 = scmp.ne.s32.totalorder %s75, %s76
      %p85 = scmp.eq.s32.totalorder %s23, 0
      %p86 = por %p84, %p85
      %p87 = scmp.ne.s32.totalorder %s75, %s76
      %p88 = scmp.eq.s32.totalorder %s24, 1
      %p89 = por %p87, %p88
      %p91 = scmp.ne.s32.totalorder %s76, %s90
      %p92 = scmp.eq.s32.totalorder %s24, 0
      %p93 = por %p91, %p92
      %s95 = sadd.s32 %s94, 1
      %p98 = scmp.eq.s32.totalorder %s18, 1
      %p99 = scmp.ne.s32.totalorder %s94, %s96
      %p100 = scmp.eq.s32.totalorder %s18, 0
      %p101 = por %p99, %p100
      %p102 = scmp.ne.s32.totalorder %s94, %s96
      %p103 = scmp.eq.s32.totalorder %s23, 1
      %p104 = por %p102, %p103
      %p105 = scmp.ne.s32.totalorder %s96, %s97
      %p106 = scmp.eq.s32.totalorder %s23, 0
      %p107 = por %p105, %p106
      %p108 = scmp.ne.s32.totalorder %s96, %s97
      %p109 = scmp.eq.s32.totalorder %s24, 1
      %p110 = por %p108, %p109
      %p112 = scmp.ne.s32.totalorder %s97, %s111
      %p113 = scmp.eq.s32.totalorder %s24, 0
      %p114 = por %p112, %p113
      %s116 = sadd.s32 %s115, 1
      %p119 = scmp.eq.s32.totalorder %s18, 1
      %p120 = scmp.ne.s32.totalorder %s115, %s117
      %p121 = scmp.eq.s32.totalorder %s18, 0
      %p122 = por %p120, %p121
      %p123 = scmp.ne.s32.totalorder %s115, %s117
      %p124 = scmp.eq.s32.totalorder %s23, 1
      %p125 = por %p123, %p124
      %p126 = scmp.ne.s32.totalorder %s117, %s118
      %p127 = scmp.eq.s32.totalorder %s23, 0
      %p128 = por %p126, %p127
      %p129 = scmp.ne.s32.totalorder %s117, %s118
      %p130 = scmp.eq.s32.totalorder %s24, 1
      %p131 = por %p129, %p130
      %p133 = scmp.ne.s32.totalorder %s118, %s132
      %p134 = scmp.eq.s32.totalorder %s24, 0
      %p135 = por %p133, %p134
      %s137 = sadd.s32 %s136, 1
      %p140 = scmp.eq.s32.totalorder %s18, 1
      %p141 = scmp.ne.s32.totalorder %s136, %s138
      %p142 = scmp.eq.s32.totalorder %s18, 0
      %p143 = por %p141, %p142
      %p144 = scmp.ne.s32.totalorder %s136, %s138
      %p145 = scmp.eq.s32.totalorder %s23, 1
      %p146 = por %p144, %p145
      %p147 = scmp.ne.s32.totalorder %s138, %s139
      %p148 = scmp.eq.s32.totalorder %s23, 0
      %p149 = por %p147, %p148
      %p150 = scmp.ne.s32.totalorder %s138, %s139
      %p151 = scmp.eq.s32.totalorder %s24, 1
      %p152 = por %p150, %p151
      %p154 = scmp.ne.s32.totalorder %s139, %s153
      %p155 = scmp.eq.s32.totalorder %s24, 0
      %p156 = por %p154, %p155
      %s158 = sadd.s32 %s157, 1
      %p161 = scmp.eq.s32.totalorder %s18, 1
      %p162 = scmp.ne.s32.totalorder %s157, %s159
      %p163 = scmp.eq.s32.totalorder %s18, 0
      %p164 = por %p162, %p163
      %p165 = scmp.ne.s32.totalorder %s157, %s159
      %p166 = scmp.eq.s32.totalorder %s23, 1
      %p167 = por %p165, %p166
      %p168 = scmp.ne.s32.totalorder %s159, %s160
      %p169 = scmp.eq.s32.totalorder %s23, 0
      %p170 = por %p168, %p169
      %p171 = scmp.ne.s32.totalorder %s159, %s160
      %p172 = scmp.eq.s32.totalorder %s24, 1
      %p173 = por %p171, %p172
      %p175 = scmp.ne.s32.totalorder %s160, %s174
      %p176 = scmp.eq.s32.totalorder %s24, 0
      %p177 = por %p175, %p176
      %s178 = ssub.s32 %s18, %s25
      %p179 = scmp.eq.s32.totalorder %s178, 0
      %s181 = sadd.s32 %s180, 1
      %s182 = scalar_select %p179, %s180, %s181
      %p185 = pneg %p179
      %p186 = scmp.eq.s32.totalorder %s18, 1
      %p187 = por %p185, %p186
      %p188 = scmp.ne.s32.totalorder %s180, %s183
      %p189 = scmp.eq.s32.totalorder %s18, 0
      %p190 = por %p188, %p189
      %p191 = scmp.ne.s32.totalorder %s180, %s183
      %p192 = scmp.eq.s32.totalorder %s23, 1
      %p193 = por %p191, %p192
      %p194 = scmp.ne.s32.totalorder %s183, %s184
      %p195 = scmp.eq.s32.totalorder %s23, 0
      %p196 = por %p194, %p195
      %p197 = scmp.ne.s32.totalorder %s183, %s184
      %p198 = scmp.eq.s32.totalorder %s24, 1
      %p199 = por %p197, %p198
      %p201 = scmp.ne.s32.totalorder %s184, %s200
      %p202 = scmp.eq.s32.totalorder %s24, 0
      %p203 = por %p201, %p202
      %p204 = scmp.le.s32.totalorder 1, %s18
      %p205 = scmp.lt.s32.totalorder %s18, 3
      %p206 = pnand %p204, %p205
      %p207 = pneg %p206
      // Predicated region
      $region9: #{tpu_custom_call.1} parent=5 // pred_check
        _
      $region10: #{tpu_custom_call.1} parent=5 // pred_check_branch
        %209 = sbr.rel (%p206) target = $region12
      $region11: #{tpu_custom_call.1} parent=5 // pred_region
        %s210 = ssub.s32 %s18, 1
        // Predicated region
        $region13: #{tpu_custom_call.1} parent=11 // pred_check
          %p211 = pneg %p65
        $region14: #{tpu_custom_call.1} parent=11 // pred_check_branch
          %213 = sbr.rel (%p211) target = $region16
        $region15: #{tpu_custom_call.1} parent=11 // pred_region
          _
        $region16: #{tpu_custom_call.1} parent=11 // pred_fallthru
          _
        // Predicated region
        $region17: #{tpu_custom_call.1} parent=11 // pred_check
          %p214 = pneg %p86
        $region18: #{tpu_custom_call.1} parent=11 // pred_check_branch
          %216 = sbr.rel (%p214) target = $region20
        $region19: #{tpu_custom_call.1} parent=11 // pred_region
          _
        $region20: #{tpu_custom_call.1} parent=11 // pred_fallthru
          _
        // Predicated region
        $region21: #{tpu_custom_call.1} parent=11 // pred_check
          %p217 = pneg %p107
        $region22: #{tpu_custom_call.1} parent=11 // pred_check_branch
          %219 = sbr.rel (%p217) target = $region24
        $region23: #{tpu_custom_call.1} parent=11 // pred_region
          _
        $region24: #{tpu_custom_call.1} parent=11 // pred_fallthru
          _
        // Predicated region
        $region25: #{tpu_custom_call.1} parent=11 // pred_check
          %p220 = pneg %p128
        $region26: #{tpu_custom_call.1} parent=11 // pred_check_branch
          %222 = sbr.rel (%p220) target = $region28
        $region27: #{tpu_custom_call.1} parent=11 // pred_region
          _
        $region28: #{tpu_custom_call.1} parent=11 // pred_fallthru
          _
        // Predicated region
        $region29: #{tpu_custom_call.1} parent=11 // pred_check
          %p223 = pneg %p149
        $region30: #{tpu_custom_call.1} parent=11 // pred_check_branch
          %225 = sbr.rel (%p223) target = $region32
        $region31: #{tpu_custom_call.1} parent=11 // pred_region
          _
        $region32: #{tpu_custom_call.1} parent=11 // pred_fallthru
          _
        // Predicated region
        $region33: #{tpu_custom_call.1} parent=11 // pred_check
          %p226 = pneg %p170
        $region34: #{tpu_custom_call.1} parent=11 // pred_check_branch
          %228 = sbr.rel (%p226) target = $region36
        $region35: #{tpu_custom_call.1} parent=11 // pred_region
          _
        $region36: #{tpu_custom_call.1} parent=11 // pred_fallthru
          _
      $region12: #{tpu_custom_call.1} parent=5 // pred_fallthru
        _
      %p229 = scmp.lt.s32.totalorder %s18, 2
      // Predicated region
      $region37: #{tpu_custom_call.1} parent=5 // pred_check
        %p230 = pneg %p229
      $region38: #{tpu_custom_call.1} parent=5 // pred_check_branch
        %232 = sbr.rel (%p230) target = $region40
      $region39: #{tpu_custom_call.1} parent=5 // pred_region
        // Predicated region
        $region41: #{tpu_custom_call.1} parent=39 // pred_check
          %p233 = pneg %p38
        $region42: #{tpu_custom_call.1} parent=39 // pred_check_branch
          %235 = sbr.rel (%p233) target = $region44
        $region43: #{tpu_custom_call.1} parent=39 // pred_region
          %s236 = smul.u32 16, %s18
          %p237 = scmp.lt.s32.totalorder %s236, 31
          %s238 = scalar_select %p237, %s236, 31
          %s239 = smul.addr %s238, 4
          %s240 = scalar_lea.vmem %s0, %s239
          %s241 = smul.u32 16, %s18
        $region44: #{tpu_custom_call.1} parent=39 // pred_fallthru
          _
      $region40: #{tpu_custom_call.1} parent=5 // pred_fallthru
        _
      %p242 = scmp.le.s32.totalorder 1, %s18
      %p243 = scmp.lt.s32.totalorder %s18, 3
      %p244 = pnand %p242, %p243
      %p245 = pneg %p244
      // Predicated region
      $region45: #{tpu_custom_call.1} parent=5 // pred_check
        _
      $region46: #{tpu_custom_call.1} parent=5 // pred_check_branch
        %247 = sbr.rel (%p244) target = $region48
      $region47: #{tpu_custom_call.1} parent=5 // pred_region
        %s248 = ssub.s32 %s18, 1
        %s249 = smul.u32 16, %s23
        %p250 = scmp.lt.s32.totalorder %s249, 31
        %s251 = scalar_select %p250, %s249, 31
        %s252 = smul.addr %s251, 4
        %s253 = scalar_lea.vmem %s0, %s252
        %p254 = pneg %p44
        %p255 = pneg %p41
        %p256 = pneg %p65
        %p257 = pneg %p62
        %p258 = pneg %p86
        %p259 = pneg %p83
        %p260 = pneg %p107
        %p261 = pneg %p104
        %p262 = pneg %p128
        %p263 = pneg %p125
        %p264 = pneg %p149
        %p265 = pneg %p146
        %p266 = pneg %p170
        %p267 = pneg %p167
        %p268 = pneg %p196
        %p269 = pneg %p193
        %s270 = sand.u32 %s183, 1
        %s271 = scalar_lea.sflag [#allocation4], %s270
        %s272 = sand.u32 %s183, 1
        %s273 = scalar_lea.vmem [#allocation3], %s272
        %s274 = smul.u32 16, %s23
        %p275 = scmp.lt.s32.totalorder %s274, 31
        %s276 = scalar_select %p275, %s274, 31
        %s277 = smul.addr %s276, 4
        %s278 = scalar_lea.vmem %s0, %s277
        %s279 = smul.u32 16, %s23
        %v281 = vld [vmem:[%s278] sm:$0xf]
        %v282 = vld [vmem:[%s278 + $0x4] sm:$0xf]
        %v283 = vld [vmem:[%s278 + $0x8] sm:$0xf]
        %v284 = vld [vmem:[%s278 + $0xc] sm:$0xf]
        %v285 = vld [vmem:[%s278 + $0x10] sm:$0xf]
        %v286 = vld [vmem:[%s278 + $0x14] sm:$0xf]
        %v287 = vld [vmem:[%s278 + $0x18] sm:$0xf]
        %v288 = vld [vmem:[%s278 + $0x1c] sm:$0xf]
        %v289 = vld [vmem:[%s278 + $0x20] sm:$0xf]
        %v290 = vld [vmem:[%s278 + $0x24] sm:$0xf]
        %v291 = vld [vmem:[%s278 + $0x28] sm:$0xf]
        %v292 = vld [vmem:[%s278 + $0x2c] sm:$0xf]
        %v293 = vld [vmem:[%s278 + $0x30] sm:$0xf]
        %v294 = vld [vmem:[%s278 + $0x34] sm:$0xf]
        %v295 = vld [vmem:[%s278 + $0x38] sm:$0xf]
        %v296 = vld [vmem:[%s278 + $0x3c] sm:$0xf]
        %v297 = vld [vmem:[%s1] sm:$0xf]
        %v298 = vld [vmem:[%s1 + $0x4] sm:$0xf]
        %v299 = vld [vmem:[%s1 + $0x8] sm:$0xf]
        %v300 = vld [vmem:[%s1 + $0xc] sm:$0xf]
        %v301 = vld [vmem:[%s2] sm:$0x1]
        %v303 = vlaneseq
        %v304 = vshrl.u32 %v303, 7
        %v305 = vsub.s32 0, %v304
        %v306 = vrot.slane %v301, %v305
        %v324 = vunpack.c.l.b16 %v281
        %v325 = vunpack.c.l.b16 %v282
        %v326 = vunpack.c.l.b16 %v283
        %v327 = vunpack.c.l.b16 %v284
        %v328 = vunpack.c.l.b16 %v285
        %v329 = vunpack.c.l.b16 %v286
        %v330 = vunpack.c.l.b16 %v287
        %v331 = vunpack.c.l.b16 %v288
        %v332 = vunpack.c.l.b16 %v289
        %v333 = vunpack.c.l.b16 %v290
        %v334 = vunpack.c.l.b16 %v291
        %v335 = vunpack.c.l.b16 %v292
        %v336 = vunpack.c.l.b16 %v293
        %v337 = vunpack.c.l.b16 %v294
        %v338 = vunpack.c.l.b16 %v295
        %v339 = vunpack.c.l.b16 %v296
        %v340 = vpack.c.b16 %v325, %v324
        %v341 = vpack.c.b16 %v327, %v326
        %v342 = vpack.c.b16 %v329, %v328
        %v343 = vpack.c.b16 %v331, %v330
        %v344 = vpack.c.b16 %v333, %v332
        %v345 = vpack.c.b16 %v335, %v334
        %v346 = vpack.c.b16 %v337, %v336
        %v347 = vpack.c.b16 %v339, %v338
        %v352 = vunpack.c.l.b16 %v297
        %v353 = vunpack.c.l.b16 %v298
        %v354 = vunpack.c.l.b16 %v299
        %v355 = vunpack.c.l.b16 %v300
        %v356 = vpack.c.b16 %v353, %v352
        %v357 = vpack.c.b16 %v355, %v354
        %vm360 = vcmask 261120
        %v362 = vsel %vm360, %v340, 0
        %v365 = vsel %vm360, %v341, 0
        %v368 = vsel %vm360, %v342, 0
        %v371 = vsel %vm360, %v343, 0
        %v374 = vsel %vm360, %v344, 0
        %v377 = vsel %vm360, %v345, 0
        %v380 = vsel %vm360, %v346, 0
        %v383 = vsel %vm360, %v347, 0
        %385 = vmatprep.subr.bf16.mxu0 0
        %386 = vmatpush1.bf16.msra.mxu0 %v356
        %387 = vmatprep.subr.bf16.mxu0 0
        %388 = vmatpush1.bf16.msra.mxu0 %v357
        %389 = vmatprep.subr.bf16.mxu0 0
        %390 = vmatpush1.bf16.msra.mxu0 0
        %391 = vmatprep.subr.bf16.mxu0 0
        %392 = vmatpush1.bf16.msra.mxu0 0
        %393 = vmatprep.subr.bf16.mxu0 0
        %394 = vmatpush1.bf16.msra.mxu0 0
        %395 = vmatprep.subr.bf16.mxu0 0
        %396 = vmatpush1.bf16.msra.mxu0 0
        %397 = vmatprep.subr.bf16.mxu0 0
        %398 = vmatpush1.bf16.msra.mxu0 0
        %399 = vmatprep.subr.bf16.mxu0 0
        %400 = vmatpush1.bf16.msra.mxu0 0
        %401 = vmatprep.subr.bf16.mxu0 0
        %402 = vmatpush1.bf16.msra.mxu0 0
        %403 = vmatprep.subr.bf16.mxu0 0
        %404 = vmatpush1.bf16.msra.mxu0 0
        %405 = vmatprep.subr.bf16.mxu0 0
        %406 = vmatpush1.bf16.msra.mxu0 0
        %407 = vmatprep.subr.bf16.mxu0 0
        %408 = vmatpush1.bf16.msra.mxu0 0
        %409 = vmatprep.subr.bf16.mxu0 0
        %410 = vmatpush1.bf16.msra.mxu0 0
        %411 = vmatprep.subr.bf16.mxu0 0
        %412 = vmatpush1.bf16.msra.mxu0 0
        %413 = vmatprep.subr.bf16.mxu0 0
        %414 = vmatpush1.bf16.msra.mxu0 0
        %415 = vmatprep.subr.bf16.mxu0 0
        %416 = vmatpush1.bf16.msra.mxu0 0
        %417 = vmatprep.mubr.bf16.mxu0 0
        %418 = vmatmul.mubr.bf16.gmra.mrb[0].mxu0 %v362
        %v419 = vpop.f32.mrb[0].mxu0
        %v420 = vadd.f32 %v306, %v419
        %v421 = vpop.f32.mrb[0].mxu0
        %v422 = vpop.f32.mrb[0].mxu0
        %v423 = vadd.f32 %v306, %v422
        %v424 = vpop.f32.mrb[0].mxu0
        %425 = vmatprep.mubr.bf16.mxu0 0
        %426 = vmatmul.mubr.bf16.gmra.mrb[0].mxu0 %v365
        %v427 = vpop.f32.mrb[0].mxu0
        %v428 = vadd.f32 %v306, %v427
        %v429 = vpop.f32.mrb[0].mxu0
        %v430 = vpop.f32.mrb[0].mxu0
        %v431 = vadd.f32 %v306, %v430
        %v432 = vpop.f32.mrb[0].mxu0
        %433 = vmatprep.mubr.bf16.mxu0 0
        %434 = vmatmul.mubr.bf16.gmra.mrb[0].mxu0 %v368
        %v435 = vpop.f32.mrb[0].mxu0
        %v436 = vadd.f32 %v306, %v435
        %v437 = vpop.f32.mrb[0].mxu0
        %v438 = vpop.f32.mrb[0].mxu0
        %v439 = vadd.f32 %v306, %v438
        %v440 = vpop.f32.mrb[0].mxu0
        %441 = vmatprep.mubr.bf16.mxu0 0
        %442 = vmatmul.mubr.bf16.gmra.mrb[0].mxu0 %v371
        %v443 = vpop.f32.mrb[0].mxu0
        %v444 = vadd.f32 %v306, %v443
        %v445 = vpop.f32.mrb[0].mxu0
        %v446 = vpop.f32.mrb[0].mxu0
        %v447 = vadd.f32 %v306, %v446
        %v448 = vpop.f32.mrb[0].mxu0
        %449 = vmatprep.mubr.bf16.mxu0 0
        %450 = vmatmul.mubr.bf16.gmra.mrb[0].mxu0 %v374
        %v451 = vpop.f32.mrb[0].mxu0
        %v452 = vadd.f32 %v306, %v451
        %v453 = vpop.f32.mrb[0].mxu0
        %v454 = vpop.f32.mrb[0].mxu0
        %v455 = vadd.f32 %v306, %v454
        %v456 = vpop.f32.mrb[0].mxu0
        %457 = vmatprep.mubr.bf16.mxu0 0
        %458 = vmatmul.mubr.bf16.gmra.mrb[0].mxu0 %v377
        %v459 = vpop.f32.mrb[0].mxu0
        %v460 = vadd.f32 %v306, %v459
        %v461 = vpop.f32.mrb[0].mxu0
        %v462 = vpop.f32.mrb[0].mxu0
        %v463 = vadd.f32 %v306, %v462
        %v464 = vpop.f32.mrb[0].mxu0
        %465 = vmatprep.mubr.bf16.mxu0 0
        %466 = vmatmul.mubr.bf16.gmra.mrb[0].mxu0 %v380
        %v467 = vpop.f32.mrb[0].mxu0
        %v468 = vadd.f32 %v306, %v467
        %v469 = vpop.f32.mrb[0].mxu0
        %v470 = vpop.f32.mrb[0].mxu0
        %v471 = vadd.f32 %v306, %v470
        %v472 = vpop.f32.mrb[0].mxu0
        %473 = vmatprep.mubr.bf16.mxu0 0
        %474 = vmatmul.mubr.bf16.gmra.mrb[0].mxu0 %v383
        %v475 = vpop.f32.mrb[0].mxu0
        %v476 = vadd.f32 %v306, %v475
        %v477 = vpop.f32.mrb[0].mxu0
        %v478 = vpop.f32.mrb[0].mxu0
        %v479 = vadd.f32 %v306, %v478
        %v480 = vpop.f32.mrb[0].mxu0
        %481 = vdwg.mxu0
        %v482 = vmax.f32 %v420, 0.0
        %v483 = vmax.f32 %v423, 0.0
        %v484 = vmax.f32 %v428, 0.0
        %v485 = vmax.f32 %v431, 0.0
        %v486 = vmax.f32 %v436, 0.0
        %v487 = vmax.f32 %v439, 0.0
        %v488 = vmax.f32 %v444, 0.0
        %v489 = vmax.f32 %v447, 0.0
        %v490 = vmax.f32 %v452, 0.0
        %v491 = vmax.f32 %v455, 0.0
        %v492 = vmax.f32 %v460, 0.0
        %v493 = vmax.f32 %v463, 0.0
        %v494 = vmax.f32 %v468, 0.0
        %v495 = vmax.f32 %v471, 0.0
        %v496 = vmax.f32 %v476, 0.0
        %v497 = vmax.f32 %v479, 0.0
        %v498 = vpack.c.bf16 %v483, %v482
        %v499 = vpack.c.bf16 %v485, %v484
        %v500 = vpack.c.bf16 %v487, %v486
        %v501 = vpack.c.bf16 %v489, %v488
        %v502 = vpack.c.bf16 %v491, %v490
        %v503 = vpack.c.bf16 %v493, %v492
        %v504 = vpack.c.bf16 %v495, %v494
        %v505 = vpack.c.bf16 %v497, %v496
        %v506 = vld [vmem:[%s3] sm:$0xf]
        %v507 = vld [vmem:[%s3 + $0x4] sm:$0xf]
        %v508 = vld [vmem:[%s3 + $0x8] sm:$0xf]
        %v509 = vld [vmem:[%s3 + $0xc] sm:$0xf]
        %v510 = vld [vmem:[%s4] sm:$0x1]
        %v512 = vlaneseq
        %v513 = vshrl.u32 %v512, 7
        %v514 = vsub.s32 0, %v513
        %v515 = vrot.slane %v510, %v514
        %v521 = vunpack.c.l.b16 %v506
        %v522 = vunpack.c.l.b16 %v507
        %v523 = vunpack.c.l.b16 %v508
        %v524 = vunpack.c.l.b16 %v509
        %v525 = vpack.c.b16 %v522, %v521
        %v526 = vpack.c.b16 %v524, %v523
        %v530 = vsel %vm360, %v498, 0
        %v533 = vsel %vm360, %v499, 0
        %v536 = vsel %vm360, %v500, 0
        %v539 = vsel %vm360, %v501, 0
        %v542 = vsel %vm360, %v502, 0
        %v545 = vsel %vm360, %v503, 0
        %v548 = vsel %vm360, %v504, 0
        %v551 = vsel %vm360, %v505, 0
        %553 = vmatprep.subr.bf16.mxu0 0
        %554 = vmatpush1.bf16.msra.mxu0 %v525
        %555 = vmatprep.subr.bf16.mxu0 0
        %556 = vmatpush1.bf16.msra.mxu0 %v526
        %557 = vmatprep.subr.bf16.mxu0 0
        %558 = vmatpush1.bf16.msra.mxu0 0
        %559 = vmatprep.subr.bf16.mxu0 0
        %560 = vmatpush1.bf16.msra.mxu0 0
        %561 = vmatprep.subr.bf16.mxu0 0
        %562 = vmatpush1.bf16.msra.mxu0 0
        %563 = vmatprep.subr.bf16.mxu0 0
        %564 = vmatpush1.bf16.msra.mxu0 0
        %565 = vmatprep.subr.bf16.mxu0 0
        %566 = vmatpush1.bf16.msra.mxu0 0
        %567 = vmatprep.subr.bf16.mxu0 0
        %568 = vmatpush1.bf16.msra.mxu0 0
        %569 = vmatprep.subr.bf16.mxu0 0
        %570 = vmatpush1.bf16.msra.mxu0 0
        %571 = vmatprep.subr.bf16.mxu0 0
        %572 = vmatpush1.bf16.msra.mxu0 0
        %573 = vmatprep.subr.bf16.mxu0 0
        %574 = vmatpush1.bf16.msra.mxu0 0
        %575 = vmatprep.subr.bf16.mxu0 0
        %576 = vmatpush1.bf16.msra.mxu0 0
        %577 = vmatprep.subr.bf16.mxu0 0
        %578 = vmatpush1.bf16.msra.mxu0 0
        %579 = vmatprep.subr.bf16.mxu0 0
        %580 = vmatpush1.bf16.msra.mxu0 0
        %581 = vmatprep.subr.bf16.mxu0 0
        %582 = vmatpush1.bf16.msra.mxu0 0
        %583 = vmatprep.subr.bf16.mxu0 0
        %584 = vmatpush1.bf16.msra.mxu0 0
        %585 = vmatprep.mubr.bf16.mxu0 0
        %586 = vmatmul.mubr.bf16.gmra.mrb[0].mxu0 %v530
        %v587 = vpop.f32.mrb[0].mxu0
        %v588 = vadd.f32 %v515, %v587
        %v589 = vpop.f32.mrb[0].mxu0
        %v590 = vpop.f32.mrb[0].mxu0
        %v591 = vadd.f32 %v515, %v590
        %v592 = vpop.f32.mrb[0].mxu0
        %593 = vmatprep.mubr.bf16.mxu0 0
        %594 = vmatmul.mubr.bf16.gmra.mrb[0].mxu0 %v533
        %v595 = vpop.f32.mrb[0].mxu0
        %v596 = vadd.f32 %v515, %v595
        %v597 = vpop.f32.mrb[0].mxu0
        %v598 = vpop.f32.mrb[0].mxu0
        %v599 = vadd.f32 %v515, %v598
        %v600 = vpop.f32.mrb[0].mxu0
        %601 = vmatprep.mubr.bf16.mxu0 0
        %602 = vmatmul.mubr.bf16.gmra.mrb[0].mxu0 %v536
        %v603 = vpop.f32.mrb[0].mxu0
        %v604 = vadd.f32 %v515, %v603
        %v605 = vpop.f32.mrb[0].mxu0
        %v606 = vpop.f32.mrb[0].mxu0
        %v607 = vadd.f32 %v515, %v606
        %v608 = vpop.f32.mrb[0].mxu0
        %609 = vmatprep.mubr.bf16.mxu0 0
        %610 = vmatmul.mubr.bf16.gmra.mrb[0].mxu0 %v539
        %v611 = vpop.f32.mrb[0].mxu0
        %v612 = vadd.f32 %v515, %v611
        %v613 = vpop.f32.mrb[0].mxu0
        %v614 = vpop.f32.mrb[0].mxu0
        %v615 = vadd.f32 %v515, %v614
        %v616 = vpop.f32.mrb[0].mxu0
        %617 = vmatprep.mubr.bf16.mxu0 0
        %618 = vmatmul.mubr.bf16.gmra.mrb[0].mxu0 %v542
        %v619 = vpop.f32.mrb[0].mxu0
        %v620 = vadd.f32 %v515, %v619
        %v621 = vpop.f32.mrb[0].mxu0
        %v622 = vpop.f32.mrb[0].mxu0
        %v623 = vadd.f32 %v515, %v622
        %v624 = vpop.f32.mrb[0].mxu0
        %625 = vmatprep.mubr.bf16.mxu0 0
        %626 = vmatmul.mubr.bf16.gmra.mrb[0].mxu0 %v545
        %v627 = vpop.f32.mrb[0].mxu0
        %v628 = vadd.f32 %v515, %v627
        %v629 = vpop.f32.mrb[0].mxu0
        %v630 = vpop.f32.mrb[0].mxu0
        %v631 = vadd.f32 %v515, %v630
        %v632 = vpop.f32.mrb[0].mxu0
        %633 = vmatprep.mubr.bf16.mxu0 0
        %634 = vmatmul.mubr.bf16.gmra.mrb[0].mxu0 %v548
        %v635 = vpop.f32.mrb[0].mxu0
        %v636 = vadd.f32 %v515, %v635
        %v637 = vpop.f32.mrb[0].mxu0
        %v638 = vpop.f32.mrb[0].mxu0
        %v639 = vadd.f32 %v515, %v638
        %v640 = vpop.f32.mrb[0].mxu0
        %641 = vmatprep.mubr.bf16.mxu0 0
        %642 = vmatmul.mubr.bf16.gmra.mrb[0].mxu0 %v551
        %v643 = vpop.f32.mrb[0].mxu0
        %v644 = vadd.f32 %v515, %v643
        %v645 = vpop.f32.mrb[0].mxu0
        %v646 = vpop.f32.mrb[0].mxu0
        %v647 = vadd.f32 %v515, %v646
        %v648 = vpop.f32.mrb[0].mxu0
        %649 = vdwg.mxu0
        %v650 = vmax.f32 %v588, 0.0
        %v651 = vmax.f32 %v591, 0.0
        %v652 = vmax.f32 %v596, 0.0
        %v653 = vmax.f32 %v599, 0.0
        %v654 = vmax.f32 %v604, 0.0
        %v655 = vmax.f32 %v607, 0.0
        %v656 = vmax.f32 %v612, 0.0
        %v657 = vmax.f32 %v615, 0.0
        %v658 = vmax.f32 %v620, 0.0
        %v659 = vmax.f32 %v623, 0.0
        %v660 = vmax.f32 %v628, 0.0
        %v661 = vmax.f32 %v631, 0.0
        %v662 = vmax.f32 %v636, 0.0
        %v663 = vmax.f32 %v639, 0.0
        %v664 = vmax.f32 %v644, 0.0
        %v665 = vmax.f32 %v647, 0.0
        %v666 = vld [vmem:[%s5] sm:$0x1]
        %v668 = vlaneseq
        %v669 = vshrl.u32 %v668, 7
        %v670 = vsub.s32 0, %v669
        %v671 = vrot.slane %v666, %v670
        %v673 = vmul.f32 %v650, %v671
        %v674 = vmul.f32 %v651, %v671
        %v675 = vmul.f32 %v652, %v671
        %v676 = vmul.f32 %v653, %v671
        %v677 = vmul.f32 %v654, %v671
        %v678 = vmul.f32 %v655, %v671
        %v679 = vmul.f32 %v656, %v671
        %v680 = vmul.f32 %v657, %v671
        %v681 = vmul.f32 %v658, %v671
        %v682 = vmul.f32 %v659, %v671
        %v683 = vmul.f32 %v660, %v671
        %v684 = vmul.f32 %v661, %v671
        %v685 = vmul.f32 %v662, %v671
        %v686 = vmul.f32 %v663, %v671
        %v687 = vmul.f32 %v664, %v671
        %v688 = vmul.f32 %v665, %v671
        %v689 = vsel %vm360, %v673, 0.0
        %690 = vadd.xlane.f32.xlu0 %v689
        %v691 = vpop.xlane.xlu0 %690
        %v692 = vsel %vm360, %v674, 0.0
        %693 = vadd.xlane.f32.xlu0 %v692
        %v694 = vpop.xlane.xlu0 %693
        %v695 = vsel %vm360, %v675, 0.0
        %696 = vadd.xlane.f32.xlu0 %v695
        %v697 = vpop.xlane.xlu0 %696
        %v698 = vsel %vm360, %v676, 0.0
        %699 = vadd.xlane.f32.xlu0 %v698
        %v700 = vpop.xlane.xlu0 %699
        %v701 = vsel %vm360, %v677, 0.0
        %702 = vadd.xlane.f32.xlu0 %v701
        %v703 = vpop.xlane.xlu0 %702
        %v704 = vsel %vm360, %v678, 0.0
        %705 = vadd.xlane.f32.xlu0 %v704
        %v706 = vpop.xlane.xlu0 %705
        %v707 = vsel %vm360, %v679, 0.0
        %708 = vadd.xlane.f32.xlu0 %v707
        %v709 = vpop.xlane.xlu0 %708
        %v710 = vsel %vm360, %v680, 0.0
        %711 = vadd.xlane.f32.xlu0 %v710
        %v712 = vpop.xlane.xlu0 %711
        %v713 = vsel %vm360, %v681, 0.0
        %714 = vadd.xlane.f32.xlu0 %v713
        %v715 = vpop.xlane.xlu0 %714
        %v716 = vsel %vm360, %v682, 0.0
        %717 = vadd.xlane.f32.xlu0 %v716
        %v718 = vpop.xlane.xlu0 %717
        %v719 = vsel %vm360, %v683, 0.0
        %720 = vadd.xlane.f32.xlu0 %v719
        %v721 = vpop.xlane.xlu0 %720
        %v722 = vsel %vm360, %v684, 0.0
        %723 = vadd.xlane.f32.xlu0 %v722
        %v724 = vpop.xlane.xlu0 %723
        %v725 = vsel %vm360, %v685, 0.0
        %726 = vadd.xlane.f32.xlu0 %v725
        %v727 = vpop.xlane.xlu0 %726
        %v728 = vsel %vm360, %v686, 0.0
        %729 = vadd.xlane.f32.xlu0 %v728
        %v730 = vpop.xlane.xlu0 %729
        %v731 = vsel %vm360, %v687, 0.0
        %732 = vadd.xlane.f32.xlu0 %v731
        %v733 = vpop.xlane.xlu0 %732
        %v734 = vsel %vm360, %v688, 0.0
        %735 = vadd.xlane.f32.xlu0 %v734
        %v736 = vpop.xlane.xlu0 %735
        %v737 = vld [vmem:[#allocation2] sm:$0x1]
        %739 = vset.pattern.permute.xlu0 0
        %740 = vperm.xlu0 %739, %v737
        %v741 = vpop.permute.xlu0 %740
        %v743 = vlaneseq
        %v744 = vshrl.u32 %v743, 7
        %v745 = vsub.s32 0, %v744
        %v746 = vrot.slane %v741, %v745
        %v747 = vadd.f32 %v691, %v746
        %v748 = vadd.f32 %v694, %v746
        %v749 = vadd.f32 %v697, %v746
        %v750 = vadd.f32 %v700, %v746
        %v751 = vadd.f32 %v703, %v746
        %v752 = vadd.f32 %v706, %v746
        %v753 = vadd.f32 %v709, %v746
        %v754 = vadd.f32 %v712, %v746
        %v755 = vadd.f32 %v715, %v746
        %v756 = vadd.f32 %v718, %v746
        %v757 = vadd.f32 %v721, %v746
        %v758 = vadd.f32 %v724, %v746
        %v759 = vadd.f32 %v727, %v746
        %v760 = vadd.f32 %v730, %v746
        %v761 = vadd.f32 %v733, %v746
        %v762 = vadd.f32 %v736, %v746
        %v763 = vsub.f32 0.0, %v747
        %v764 = vsub.f32 0.0, %v748
        %v765 = vsub.f32 0.0, %v749
        %v766 = vsub.f32 0.0, %v750
        %v767 = vsub.f32 0.0, %v751
        %v768 = vsub.f32 0.0, %v752
        %v769 = vsub.f32 0.0, %v753
        %v770 = vsub.f32 0.0, %v754
        %v771 = vsub.f32 0.0, %v755
        %v772 = vsub.f32 0.0, %v756
        %v773 = vsub.f32 0.0, %v757
        %v774 = vsub.f32 0.0, %v758
        %v775 = vsub.f32 0.0, %v759
        %v776 = vsub.f32 0.0, %v760
        %v777 = vsub.f32 0.0, %v761
        %v778 = vsub.f32 0.0, %v762
        %v779 = vmul.f32 %v763, 1.442695
        %v780 = vpow.pop %v779
        %v781 = vmul.f32 %v764, 1.442695
        %v782 = vpow.pop %v781
        %v783 = vmul.f32 %v765, 1.442695
        %v784 = vpow.pop %v783
        %v785 = vmul.f32 %v766, 1.442695
        %v786 = vpow.pop %v785
        %v787 = vmul.f32 %v767, 1.442695
        %v788 = vpow.pop %v787
        %v789 = vmul.f32 %v768, 1.442695
        %v790 = vpow.pop %v789
        %v791 = vmul.f32 %v769, 1.442695
        %v792 = vpow.pop %v791
        %v793 = vmul.f32 %v770, 1.442695
        %v794 = vpow.pop %v793
        %v795 = vmul.f32 %v771, 1.442695
        %v796 = vpow.pop %v795
        %v797 = vmul.f32 %v772, 1.442695
        %v798 = vpow.pop %v797
        %v799 = vmul.f32 %v773, 1.442695
        %v800 = vpow.pop %v799
        %v801 = vmul.f32 %v774, 1.442695
        %v802 = vpow.pop %v801
        %v803 = vmul.f32 %v775, 1.442695
        %v804 = vpow.pop %v803
        %v805 = vmul.f32 %v776, 1.442695
        %v806 = vpow.pop %v805
        %v807 = vmul.f32 %v777, 1.442695
        %v808 = vpow.pop %v807
        %v809 = vmul.f32 %v778, 1.442695
        %v810 = vpow.pop %v809
        %v811 = vadd.f32 %v780, 1.0
        %v812 = vadd.f32 %v782, 1.0
        %v813 = vadd.f32 %v784, 1.0
        %v814 = vadd.f32 %v786, 1.0
        %v815 = vadd.f32 %v788, 1.0
        %v816 = vadd.f32 %v790, 1.0
        %v817 = vadd.f32 %v792, 1.0
        %v818 = vadd.f32 %v794, 1.0
        %v819 = vadd.f32 %v796, 1.0
        %v820 = vadd.f32 %v798, 1.0
        %v821 = vadd.f32 %v800, 1.0
        %v822 = vadd.f32 %v802, 1.0
        %v823 = vadd.f32 %v804, 1.0
        %v824 = vadd.f32 %v806, 1.0
        %v825 = vadd.f32 %v808, 1.0
        %v826 = vadd.f32 %v810, 1.0
        %v827 = vrcp.pop %v811
        %v828 = vrcp.pop %v812
        %v829 = vrcp.pop %v813
        %v830 = vrcp.pop %v814
        %v831 = vrcp.pop %v815
        %v832 = vrcp.pop %v816
        %v833 = vrcp.pop %v817
        %v834 = vrcp.pop %v818
        %v835 = vrcp.pop %v819
        %v836 = vrcp.pop %v820
        %v837 = vrcp.pop %v821
        %v838 = vrcp.pop %v822
        %v839 = vrcp.pop %v823
        %v840 = vrcp.pop %v824
        %v841 = vrcp.pop %v825
        %v842 = vrcp.pop %v826
        %v859 = vlaneseq
        %v860 = vand.u32 %v859, 127
        %v861 = vlaneseq
        %v862 = vshrl.u32 %v861, 7
        %v863 = vsub.s32 %v860, %v862
        %v864 = vrot.slane %v827, %v863
        %v865 = vadd.s32 %v860, 4294967288
        %v866 = vlaneseq
        %v867 = vshrl.u32 %v866, 7
        %v868 = vsub.s32 %v865, %v867
        %v869 = vrot.slane %v828, %v868
        %vm870 = vcmask 130112
        %v871 = vsel %vm870, %v869, %v864
        %v872 = vadd.s32 %v860, 4294967280
        %v873 = vlaneseq
        %v874 = vshrl.u32 %v873, 7
        %v875 = vsub.s32 %v872, %v874
        %v876 = vrot.slane %v829, %v875
        %vm877 = vcmask 195712
        %v878 = vsel %vm877, %v876, %v871
        %v879 = vadd.s32 %v860, 4294967272
        %v880 = vlaneseq
        %v881 = vshrl.u32 %v880, 7
        %v882 = vsub.s32 %v879, %v881
        %v883 = vrot.slane %v830, %v882
        %vm884 = vcmask 261312
        %v885 = vsel %vm884, %v883, %v878
        %v886 = vadd.s32 %v860, 4294967264
        %v887 = vlaneseq
        %v888 = vshrl.u32 %v887, 7
        %v889 = vsub.s32 %v886, %v888
        %v890 = vrot.slane %v831, %v889
        %vm891 = vcmask 326912
        %v892 = vsel %vm891, %v890, %v885
        %v893 = vadd.s32 %v860, 4294967256
        %v894 = vlaneseq
        %v895 = vshrl.u32 %v894, 7
        %v896 = vsub.s32 %v893, %v895
        %v897 = vrot.slane %v832, %v896
        %vm898 = vcmask 392512
        %v899 = vsel %vm898, %v897, %v892
        %v900 = vadd.s32 %v860, 4294967248
        %v901 = vlaneseq
        %v902 = vshrl.u32 %v901, 7
        %v903 = vsub.s32 %v900, %v902
        %v904 = vrot.slane %v833, %v903
        %vm905 = vcmask 458112
        %v906 = vsel %vm905, %v904, %v899
        %v907 = vadd.s32 %v860, 4294967240
        %v908 = vlaneseq
        %v909 = vshrl.u32 %v908, 7
        %v910 = vsub.s32 %v907, %v909
        %v911 = vrot.slane %v834, %v910
        %vm912 = vcmask 523712
        %v913 = vsel %vm912, %v911, %v906
        %v914 = vadd.s32 %v860, 4294967232
        %v915 = vlaneseq
        %v916 = vshrl.u32 %v915, 7
        %v917 = vsub.s32 %v914, %v916
        %v918 = vrot.slane %v835, %v917
        %vm919 = vcmask 589312
        %v920 = vsel %vm919, %v918, %v913
        %v921 = vadd.s32 %v860, 4294967224
        %v922 = vlaneseq
        %v923 = vshrl.u32 %v922, 7
        %v924 = vsub.s32 %v921, %v923
        %v925 = vrot.slane %v836, %v924
        %vm926 = vcmask 654912
        %v927 = vsel %vm926, %v925, %v920
        %v928 = vadd.s32 %v860, 4294967216
        %v929 = vlaneseq
        %v930 = vshrl.u32 %v929, 7
        %v931 = vsub.s32 %v928, %v930
        %v932 = vrot.slane %v837, %v931
        %vm933 = vcmask 720512
        %v934 = vsel %vm933, %v932, %v927
        %v935 = vadd.s32 %v860, 4294967208
        %v936 = vlaneseq
        %v937 = vshrl.u32 %v936, 7
        %v938 = vsub.s32 %v935, %v937
        %v939 = vrot.slane %v838, %v938
        %vm940 = vcmask 786112
        %v941 = vsel %vm940, %v939, %v934
        %v942 = vadd.s32 %v860, 4294967200
        %v943 = vlaneseq
        %v944 = vshrl.u32 %v943, 7
        %v945 = vsub.s32 %v942, %v944
        %v946 = vrot.slane %v839, %v945
        %vm947 = vcmask 851712
        %v948 = vsel %vm947, %v946, %v941
        %v949 = vadd.s32 %v860, 4294967192
        %v950 = vlaneseq
        %v951 = vshrl.u32 %v950, 7
        %v952 = vsub.s32 %v949, %v951
        %v953 = vrot.slane %v840, %v952
        %vm954 = vcmask 917312
        %v955 = vsel %vm954, %v953, %v948
        %v956 = vadd.s32 %v860, 4294967184
        %v957 = vlaneseq
        %v958 = vshrl.u32 %v957, 7
        %v959 = vsub.s32 %v956, %v958
        %v960 = vrot.slane %v841, %v959
        %vm961 = vcmask 982912
        %v962 = vsel %vm961, %v960, %v955
        %v963 = vadd.s32 %v860, 4294967176
        %v964 = vlaneseq
        %v965 = vshrl.u32 %v964, 7
        %v966 = vsub.s32 %v963, %v965
        %v967 = vrot.slane %v842, %v966
        %vm968 = vcmask 1048512
        %v969 = vsel %vm968, %v967, %v962
        %971 = vst [vmem:[%s273] sm:$0x1] %v969
        %s972 = sand.u32 %s183, 1
        %s973 = scalar_lea.sflag [#allocation4], %s972
        %s974 = sand.u32 %s183, 1
        %s975 = scalar_lea.vmem [#allocation3], %s974
        // Predicated region
        $region49: #{tpu_custom_call.1} parent=47 // pred_check
          %p976 = pneg %p193
        $region50: #{tpu_custom_call.1} parent=47 // pred_check_branch
          %978 = sbr.rel (%p976) target = $region52
        $region51: #{tpu_custom_call.1} parent=47 // pred_region
          %s980 = ssub.s32 16, 16
          %981 = vsyncadd %s973, %s980
          %s982 = smul.addr %s23, 16
          %s983 = scalar_lea.hbm %s7, %s982
          %s985 = sshll.u32 %s975, 4
          %s986 = int_to_ptr.vmem [resolvable:$true] %s985
          %988 = dma.vmem_to_hbm [thread:$0]  %s986, 16, %s983, %s973
        $region52: #{tpu_custom_call.1} parent=47 // pred_fallthru
          _
      $region48: #{tpu_custom_call.1} parent=5 // pred_fallthru
        _
      %p989 = scmp.le.s32.totalorder 2, %s18
      // Predicated region
      $region53: #{tpu_custom_call.1} parent=5 // pred_check
        %p990 = pneg %p989
      $region54: #{tpu_custom_call.1} parent=5 // pred_check_branch
        %992 = sbr.rel (%p990) target = $region56
      $region55: #{tpu_custom_call.1} parent=5 // pred_region
        %s993 = ssub.s32 %s18, 2
        // Predicated region
        $region57: #{tpu_custom_call.1} parent=55 // pred_check
          %p994 = pneg %p199
        $region58: #{tpu_custom_call.1} parent=55 // pred_check_branch
          %996 = sbr.rel (%p994) target = $region60
        $region59: #{tpu_custom_call.1} parent=55 // pred_region
          %s997 = sand.u32 %s184, 1
          %s998 = scalar_lea.sflag [#allocation4], %s997
          %s999 = sand.u32 %s184, 1
          %s1000 = scalar_lea.vmem [#allocation3], %s999
          %1001 = dma.done %s998, 16
        $region60: #{tpu_custom_call.1} parent=55 // pred_fallthru
          _
      $region56: #{tpu_custom_call.1} parent=5 // pred_fallthru
        _
    $region6: #{tpu_custom_call.1} parent=1 // loop_footer
      %s22 = sadd.s32 1, %s18
    $region7: #{tpu_custom_call.1} parent=1 // loop_footer_branch
      %17 = sbr.rel target = $region3
    $region8: #{tpu_custom_call.1} parent=1 // loop_exit
      _
    %1002 = vsyncpa [#allocation4], 1
    %s1003 = scalar_lea.sflag [#allocation4], 1
    %1004 = vsyncpa %s1003, 1

</llo_original>
